<compile_context>
chip_gen: v6e
topology: v6e:2x2x1
jax: 0.10.0
libtpu: 0.0.40
codegen_flags: <defaults>
</compile_context>

<pallas_src>
import jax
import jax.numpy as jnp
from jax.experimental import pallas as pl
from jax.experimental.pallas import tpu as pltpu


def _round_up(x, m):
    return -(-x // m) * m


def _agru_kernel(facts_ref,   # (T*Bb, H_in) bf16   chunk of facts, t-major rows
                 g_ref,       # (Bb, T)      f32    attention gates for this chunk
                 wrw_ref,     # (H_in, 2Hp)  bf16   [Wr | W]  (each half 128-aligned)
                 uru_ref,     # (Hp,  2Hp)   bf16   [Ur | U]
                 b_ref,       # (1,   2Hp)   f32    [bUr | bW]
                 c_ref,       # (Bb,  Hp)    f32    output block == recurrent carry
                 fx_ref):     # (T*Bb, 2Hp)  f32    VMEM scratch for chunk projection
    bb, t_steps = g_ref.shape
    hp = uru_ref.shape[0]

    # Initialize the carry at the first seq chunk of this batch chunk.
    @pl.when(pl.program_id(1) == 0)
    def _init():
        c_ref[...] = jnp.zeros_like(c_ref)

    # One big MXU op for the whole chunk's input projection:
    #   fx[t*Bb:(t+1)*Bb] = fact_t @ [Wr | W] + [bUr | bW]
    fx_ref[...] = jnp.dot(facts_ref[...], wrw_ref[...],
                          preferred_element_type=jnp.float32) + b_ref[...]

    uru = uru_ref[...]          # (Hp, 2Hp) bf16, resident
    g_chunk = g_ref[...]        # (Bb, T)   f32
    c = c_ref[...]              # (Bb, Hp)  f32 carry

    # Small fixed chunk -> static unroll (the seq grid axis subsumes the long loop).
    for t in range(t_steps):
        fx = fx_ref[t * bb:(t + 1) * bb, :]        # (Bb, 2Hp) static aligned slice
        g = g_chunk[:, t:t + 1]                    # (Bb, 1)
        # Single fused recurrent matmul per step: c @ [Ur | U]
        cx = jnp.dot(c.astype(jnp.bfloat16), uru,
                     preferred_element_type=jnp.float32)           # (Bb, 2Hp)
        r = jax.nn.sigmoid(fx[:, :hp] + cx[:, :hp])                # reset gate
        h_tilda = jnp.tanh(fx[:, hp:] + r * cx[:, hp:])            # candidate
        c = c + g * (h_tilda - c)                                  # fused blend

    c_ref[...] = c


def attention_gru(facts, G, params, *, chunk_steps=8):
    """facts: (B, S, H_in) f32, G: (B, S) f32  ->  c: (B, H) f32."""
    B, S, H_in = facts.shape
    H = params["Wr"].shape[1]

    Hp = _round_up(H, 128)                 # lane-align each gate block
    Bp = _round_up(B, 8)                   # pad batch to sublane width
    nb = 2 if Bp >= 512 else 1             # megacore batch split (v7x); keep slabs big
    Bb = Bp // nb
    T = max(1, min(chunk_steps, S))        # steps per seq chunk
    Sp = _round_up(S, T)
    ns = Sp // T

    # ---- relayout inputs (zero padding keeps padded rows/steps inert: g=0) ----
    facts_sm = jnp.transpose(facts, (1, 0, 2))                       # (S, B, H_in)
    facts_pad = jnp.zeros((Sp, Bp, H_in), jnp.float32).at[:S, :B].set(facts_sm)
    facts4 = (facts_pad.reshape(ns, T, nb, Bb, H_in)
              .transpose(2, 0, 1, 3, 4)
              .reshape(nb, ns, T * Bb, H_in)
              .astype(jnp.bfloat16))                                  # (nb, ns, T*Bb, H_in)

    G_pad = jnp.zeros((Bp, Sp), jnp.float32).at[:B, :S].set(G)
    g4 = (G_pad.reshape(nb, Bb, ns, T)
          .transpose(0, 2, 1, 3)).astype(jnp.float32)                 # (nb, ns, Bb, T)

    # ---- fused, 128-lane-aligned gate weights / biases ----
    def pad2(w, rows, cols):
        return jnp.zeros((rows, cols), jnp.float32).at[:w.shape[0], :w.shape[1]].set(w)

    wrw = jnp.concatenate([pad2(params["Wr"], H_in, Hp),
                           pad2(params["W"], H_in, Hp)], axis=1).astype(jnp.bfloat16)
    uru = jnp.concatenate([pad2(params["Ur"], Hp, Hp),
                           pad2(params["U"], Hp, Hp)], axis=1).astype(jnp.bfloat16)
    bias = jnp.concatenate([pad2(params["bUr"], 1, Hp),
                            pad2(params["bW"], 1, Hp)], axis=1).astype(jnp.float32)

    # ---- VMEM budget: weights + double-buffered chunk inputs + scratch + out ----
    facts_blk = T * Bb * H_in * 2
    g_blk = _round_up(Bb, 8) * _round_up(T, 128) * 4
    w_bytes = (H_in * 2 * Hp + Hp * 2 * Hp) * 2 + 8 * 2 * Hp * 4
    out_blk = Bb * Hp * 4
    fx_blk = T * Bb * 2 * Hp * 4
    vmem_limit = int(min(64 * 1024 * 1024,
                         2 * (facts_blk + g_blk) + 2 * w_bytes
                         + 2 * out_blk + fx_blk + (4 << 20)))

    sq = pl.Squeezed()
    grid_spec = pltpu.PrefetchScalarGridSpec(
        num_scalar_prefetch=0,
        grid=(nb, ns),
        in_specs=[
            pl.BlockSpec((sq, sq, T * Bb, H_in), lambda b, s: (b, s, 0, 0)),  # facts chunk
            pl.BlockSpec((sq, sq, Bb, T),        lambda b, s: (b, s, 0, 0)),  # g chunk
            pl.BlockSpec((H_in, 2 * Hp),         lambda b, s: (0, 0)),        # [Wr|W] resident
            pl.BlockSpec((Hp, 2 * Hp),           lambda b, s: (0, 0)),        # [Ur|U] resident
            pl.BlockSpec((1, 2 * Hp),            lambda b, s: (0, 0)),        # bias  resident
        ],
        # Constant across the seq axis -> this block is the resident recurrent carry.
        out_specs=pl.BlockSpec((Bb, Hp), lambda b, s: (b, 0)),
        scratch_shapes=[pltpu.VMEM((T * Bb, 2 * Hp), jnp.float32)],
    )

    c_pad = pl.pallas_call(
        _agru_kernel,
        out_shape=jax.ShapeDtypeStruct((Bp, Hp), jnp.float32),
        grid_spec=grid_spec,
        compiler_params=pltpu.CompilerParams(
            dimension_semantics=("parallel", "arbitrary"),
            vmem_limit_bytes=vmem_limit),
    )(facts4, g4, wrw, uru, bias)

    return c_pad[:B, :H]


attention_gru_jit = jax.jit(attention_gru)


# ----------------------------- references ------------------------------------

def _reference_f32(facts, G, params):
    """Pure-f32 JAX mirror of the PyTorch forward."""
    B, S, _ = facts.shape
    H = params["Wr"].shape[1]
    c = jnp.zeros((B, H), jnp.float32)
    for sid in range(S):
        fact = facts[:, sid, :]
        g = G[:, sid][:, None]
        r = jax.nn.sigmoid(fact @ params["Wr"] + c @ params["Ur"] + params["bUr"])
        h = jnp.tanh(fact @ params["W"] + params["bW"] + r * (c @ params["U"]))
        c = g * h + (1.0 - g) * c
    return c


def _reference_bf16(facts, G, params):
    """Reference matching the kernel numerics (bf16 matmul operands, f32 acc)."""
    B, S, _ = facts.shape
    H = params["Wr"].shape[1]
    wrw = jnp.concatenate([params["Wr"], params["W"]], axis=1).astype(jnp.bfloat16)
    uru = jnp.concatenate([params["Ur"], params["U"]], axis=1).astype(jnp.bfloat16)
    b = jnp.concatenate([params["bUr"], params["bW"]], axis=1)
    c = jnp.zeros((B, H), jnp.float32)
    for sid in range(S):
        fact = facts[:, sid, :].astype(jnp.bfloat16)
        g = G[:, sid][:, None]
        fx = jnp.dot(fact, wrw, preferred_element_type=jnp.float32) + b
        cx = jnp.dot(c.astype(jnp.bfloat16), uru, preferred_element_type=jnp.float32)
        r = jax.nn.sigmoid(fx[:, :H] + cx[:, :H])
        h = jnp.tanh(fx[:, H:] + r * cx[:, H:])
        c = c + g * (h - c)
    return c


def init_params(key, input_size, hidden_size):
    """Deterministic uniform init (stand-in for uniform_init_rnn)."""
    ks = jax.random.split(key, 6)
    lim = 1.0 / jnp.sqrt(hidden_size)
    u = lambda k, shape: jax.random.uniform(k, shape, jnp.float32, -lim, lim)
    return {
        "Wr": u(ks[0], (input_size, hidden_size)),    # no bias
        "Ur": u(ks[1], (hidden_size, hidden_size)),
        "bUr": u(ks[2], (1, hidden_size)),
        "W": u(ks[3], (input_size, hidden_size)),
        "bW": u(ks[4], (1, hidden_size)),
        "U": u(ks[5], (hidden_size, hidden_size)),    # no bias
    }


if __name__ == "__main__":
    batch, seq_len, hidden = 2, 8, 32
    input_size = hidden  # forward() feeds facts (B,S,hidden) into Wr(input_size)

    key = jax.random.PRNGKey(0)
    k_f, k_g, k_p = jax.random.split(key, 3)
    facts = jax.random.normal(k_f, (batch, seq_len, hidden), jnp.float32)
    G = jax.nn.softmax(jax.random.normal(k_g, (batch, seq_len), jnp.float32), axis=-1)
    params = init_params(k_p, input_size, hidden)

    out = jax.block_until_ready(attention_gru_jit(facts, G, params))
    assert out.shape == (batch, hidden)

    # Tight check vs a reference with matching (bf16-matmul, f32-accumulate) numerics.
    ref_bf = _reference_bf16(facts, G, params)
    assert jnp.allclose(out, ref_bf, atol=2e-3, rtol=2e-3), "mismatch vs bf16-matched reference"

    # Loose sanity check vs the pure-f32 PyTorch-equivalent reference.
    ref_32 = _reference_f32(facts, G, params)
    assert jnp.allclose(out, ref_32, atol=5e-2, rtol=5e-2), "mismatch vs f32 reference"

    print("KERNEL_OK")
</pallas_src>

<mosaic_0001>
module attributes {stable_mosaic.version = 11 : i64} {
  func.func @_agru_kernel(%arg0: i32, %arg1: i32, %arg2: memref<1x1x64x32xbf16, #tpu.memory_space<vmem>>, %arg3: memref<1x1x8x8xf32, #tpu.memory_space<vmem>>, %arg4: memref<32x256xbf16, #tpu.memory_space<vmem>>, %arg5: memref<128x256xbf16, #tpu.memory_space<vmem>>, %arg6: memref<1x256xf32, #tpu.memory_space<vmem>>, %arg7: memref<8x128xf32, #tpu.memory_space<vmem>>, %arg8: memref<64x256xf32, #tpu.memory_space<vmem>>) attributes {dimension_semantics = [#tpu.dimension_semantics<parallel>, #tpu.dimension_semantics<arbitrary>], iteration_bounds = array<i64: 1, 1>, scalar_prefetch = 0 : i64, scratch_operands = 1 : i64, tpu.core_type = #tpu.core_type<tc>, window_params = [{transform_indices = @transform_0, window_bounds = array<i64: 1, 1, 64, 32>}, {transform_indices = @transform_1, window_bounds = array<i64: 1, 1, 8, 8>}, {pipeline_mode = #tpu.pipeline_mode<synchronous>, transform_indices = @transform_2, window_bounds = array<i64: 32, 256>}, {pipeline_mode = #tpu.pipeline_mode<synchronous>, transform_indices = @transform_3, window_bounds = array<i64: 128, 256>}, {pipeline_mode = #tpu.pipeline_mode<synchronous>, transform_indices = @transform_4, window_bounds = array<i64: 1, 256>}, {transform_indices = @transform_5, window_bounds = array<i64: 8, 128>}]} {
    %c0_i32 = arith.constant 0 : i32
    %0 = arith.cmpi eq, %arg1, %c0_i32 : i32
    %1 = arith.extui %0 : i1 to i32
    %c0_i32_0 = arith.constant 0 : i32
    %2 = arith.cmpi ne, %1, %c0_i32_0 : i32
    scf.if %2 {
      %cst_45 = arith.constant 0.000000e+00 : f32
      %184 = vector.broadcast %cst_45 : f32 to vector<8x128xf32>
      %c0_46 = arith.constant 0 : index
      %c0_47 = arith.constant 0 : index
      %185 = vector.load %arg7[%c0_46, %c0_47] : memref<8x128xf32, #tpu.memory_space<vmem>>, vector<8x128xf32>
      tpu.vector_store %arg7[%c0_46, %c0_47], %184 {strides = array<i32>} : memref<8x128xf32, #tpu.memory_space<vmem>>, vector<8x128xf32>,
    } else {
    }
    %c0 = arith.constant 0 : index
    %c0_1 = arith.constant 0 : index
    %c0_2 = arith.constant 0 : index
    %c0_3 = arith.constant 0 : index
    %3 = vector.load %arg2[%c0, %c0_1, %c0_2, %c0_3] : memref<1x1x64x32xbf16, #tpu.memory_space<vmem>>, vector<1x1x64x32xbf16>
    %4 = vector.shape_cast %3 : vector<1x1x64x32xbf16> to vector<64x32xbf16>
    %c0_4 = arith.constant 0 : index
    %c0_5 = arith.constant 0 : index
    %5 = vector.load %arg4[%c0_4, %c0_5] : memref<32x256xbf16, #tpu.memory_space<vmem>>, vector<32x256xbf16>
    %cst = arith.constant dense<0.000000e+00> : vector<64x256xf32>
    %6 = tpu.matmul %4, %5, %cst {dimension_numbers = #tpu.dot_dimension_numbers<[1], [0], [0], [1], [0, 0, 1, 1], [], []>} : vector<64x32xbf16>, vector<32x256xbf16>, vector<64x256xf32> -> vector<64x256xf32>
    %c0_6 = arith.constant 0 : index
    %c0_7 = arith.constant 0 : index
    %7 = vector.load %arg6[%c0_6, %c0_7] : memref<1x256xf32, #tpu.memory_space<vmem>>, vector<1x256xf32>
    %8 = vector.broadcast %7 : vector<1x256xf32> to vector<64x256xf32>
    %9 = arith.addf %6, %8 : vector<64x256xf32>
    %c0_8 = arith.constant 0 : index
    %c0_9 = arith.constant 0 : index
    %10 = vector.load %arg8[%c0_8, %c0_9] : memref<64x256xf32, #tpu.memory_space<vmem>>, vector<64x256xf32>
    tpu.vector_store %arg8[%c0_8, %c0_9], %9 {strides = array<i32>} : memref<64x256xf32, #tpu.memory_space<vmem>>, vector<64x256xf32>,
    %c0_10 = arith.constant 0 : index
    %c0_11 = arith.constant 0 : index
    %11 = vector.load %arg5[%c0_10, %c0_11] : memref<128x256xbf16, #tpu.memory_space<vmem>>, vector<128x256xbf16>
    %c0_12 = arith.constant 0 : index
    %c0_13 = arith.constant 0 : index
    %c0_14 = arith.constant 0 : index
    %c0_15 = arith.constant 0 : index
    %12 = vector.load %arg3[%c0_12, %c0_13, %c0_14, %c0_15] : memref<1x1x8x8xf32, #tpu.memory_space<vmem>>, vector<1x1x8x8xf32>
    %13 = vector.shape_cast %12 : vector<1x1x8x8xf32> to vector<8x8xf32>
    %c0_16 = arith.constant 0 : index
    %c0_17 = arith.constant 0 : index
    %14 = vector.load %arg7[%c0_16, %c0_17] : memref<8x128xf32, #tpu.memory_space<vmem>>, vector<8x128xf32>
    %c0_18 = arith.constant 0 : index
    %c0_19 = arith.constant 0 : index
    %15 = vector.load %arg8[%c0_18, %c0_19] : memref<64x256xf32, #tpu.memory_space<vmem>>, vector<8x256xf32>
    %16 = vector.extract_strided_slice %13 {offsets = [0, 0], sizes = [8, 1], strides = [1, 1]} : vector<8x8xf32> to vector<8x1xf32>
    %17 = arith.truncf %14 : vector<8x128xf32> to vector<8x128xbf16>
    %cst_20 = arith.constant dense<0.000000e+00> : vector<8x256xf32>
    %18 = tpu.matmul %17, %11, %cst_20 {dimension_numbers = #tpu.dot_dimension_numbers<[1], [0], [0], [1], [0, 0, 1, 1], [], []>} : vector<8x128xbf16>, vector<128x256xbf16>, vector<8x256xf32> -> vector<8x256xf32>
    %19 = vector.extract_strided_slice %15 {offsets = [0, 0], sizes = [8, 128], strides = [1, 1]} : vector<8x256xf32> to vector<8x128xf32>
    %20 = vector.extract_strided_slice %18 {offsets = [0, 0], sizes = [8, 128], strides = [1, 1]} : vector<8x256xf32> to vector<8x128xf32>
    %21 = arith.addf %19, %20 : vector<8x128xf32>
    %22 = arith.negf %21 : vector<8x128xf32>
    %23 = math.exp %22 : vector<8x128xf32>
    %cst_21 = arith.constant 1.000000e+00 : f32
    %24 = vector.broadcast %cst_21 : f32 to vector<8x128xf32>
    %25 = arith.addf %24, %23 : vector<8x128xf32>
    %26 = arith.divf %24, %25 : vector<8x128xf32>
    %27 = vector.extract_strided_slice %15 {offsets = [0, 128], sizes = [8, 128], strides = [1, 1]} : vector<8x256xf32> to vector<8x128xf32>
    %28 = vector.extract_strided_slice %18 {offsets = [0, 128], sizes = [8, 128], strides = [1, 1]} : vector<8x256xf32> to vector<8x128xf32>
    %29 = arith.mulf %26, %28 : vector<8x128xf32>
    %30 = arith.addf %27, %29 : vector<8x128xf32>
    %31 = math.tanh %30 : vector<8x128xf32>
    %32 = arith.subf %31, %14 : vector<8x128xf32>
    %33 = vector.broadcast %16 : vector<8x1xf32> to vector<8x128xf32>
    %34 = arith.mulf %33, %32 : vector<8x128xf32>
    %35 = arith.addf %14, %34 : vector<8x128xf32>
    %c8 = arith.constant 8 : index
    %c0_22 = arith.constant 0 : index
    %36 = vector.load %arg8[%c8, %c0_22] : memref<64x256xf32, #tpu.memory_space<vmem>>, vector<8x256xf32>
    %37 = vector.extract_strided_slice %13 {offsets = [0, 1], sizes = [8, 1], strides = [1, 1]} : vector<8x8xf32> to vector<8x1xf32>
    %38 = arith.truncf %35 : vector<8x128xf32> to vector<8x128xbf16>
    %cst_23 = arith.constant dense<0.000000e+00> : vector<8x256xf32>
    %39 = tpu.matmul %38, %11, %cst_23 {dimension_numbers = #tpu.dot_dimension_numbers<[1], [0], [0], [1], [0, 0, 1, 1], [], []>} : vector<8x128xbf16>, vector<128x256xbf16>, vector<8x256xf32> -> vector<8x256xf32>
    %40 = vector.extract_strided_slice %36 {offsets = [0, 0], sizes = [8, 128], strides = [1, 1]} : vector<8x256xf32> to vector<8x128xf32>
    %41 = vector.extract_strided_slice %39 {offsets = [0, 0], sizes = [8, 128], strides = [1, 1]} : vector<8x256xf32> to vector<8x128xf32>
    %42 = arith.addf %40, %41 : vector<8x128xf32>
    %43 = arith.negf %42 : vector<8x128xf32>
    %44 = math.exp %43 : vector<8x128xf32>
    %cst_24 = arith.constant 1.000000e+00 : f32
    %45 = vector.broadcast %cst_24 : f32 to vector<8x128xf32>
    %46 = arith.addf %45, %44 : vector<8x128xf32>
    %47 = arith.divf %45, %46 : vector<8x128xf32>
    %48 = vector.extract_strided_slice %36 {offsets = [0, 128], sizes = [8, 128], strides = [1, 1]} : vector<8x256xf32> to vector<8x128xf32>
    %49 = vector.extract_strided_slice %39 {offsets = [0, 128], sizes = [8, 128], strides = [1, 1]} : vector<8x256xf32> to vector<8x128xf32>
    %50 = arith.mulf %47, %49 : vector<8x128xf32>
    %51 = arith.addf %48, %50 : vector<8x128xf32>
    %52 = math.tanh %51 : vector<8x128xf32>
    %53 = arith.subf %52, %35 : vector<8x128xf32>
    %54 = vector.broadcast %37 : vector<8x1xf32> to vector<8x128xf32>
    %55 = arith.mulf %54, %53 : vector<8x128xf32>
    %56 = arith.addf %35, %55 : vector<8x128xf32>
    %c16 = arith.constant 16 : index
    %c0_25 = arith.constant 0 : index
    %57 = vector.load %arg8[%c16, %c0_25] : memref<64x256xf32, #tpu.memory_space<vmem>>, vector<8x256xf32>
    %58 = vector.extract_strided_slice %13 {offsets = [0, 2], sizes = [8, 1], strides = [1, 1]} : vector<8x8xf32> to vector<8x1xf32>
    %59 = arith.truncf %56 : vector<8x128xf32> to vector<8x128xbf16>
    %cst_26 = arith.constant dense<0.000000e+00> : vector<8x256xf32>
    %60 = tpu.matmul %59, %11, %cst_26 {dimension_numbers = #tpu.dot_dimension_numbers<[1], [0], [0], [1], [0, 0, 1, 1], [], []>} : vector<8x128xbf16>, vector<128x256xbf16>, vector<8x256xf32> -> vector<8x256xf32>
    %61 = vector.extract_strided_slice %57 {offsets = [0, 0], sizes = [8, 128], strides = [1, 1]} : vector<8x256xf32> to vector<8x128xf32>
    %62 = vector.extract_strided_slice %60 {offsets = [0, 0], sizes = [8, 128], strides = [1, 1]} : vector<8x256xf32> to vector<8x128xf32>
    %63 = arith.addf %61, %62 : vector<8x128xf32>
    %64 = arith.negf %63 : vector<8x128xf32>
    %65 = math.exp %64 : vector<8x128xf32>
    %cst_27 = arith.constant 1.000000e+00 : f32
    %66 = vector.broadcast %cst_27 : f32 to vector<8x128xf32>
    %67 = arith.addf %66, %65 : vector<8x128xf32>
    %68 = arith.divf %66, %67 : vector<8x128xf32>
    %69 = vector.extract_strided_slice %57 {offsets = [0, 128], sizes = [8, 128], strides = [1, 1]} : vector<8x256xf32> to vector<8x128xf32>
    %70 = vector.extract_strided_slice %60 {offsets = [0, 128], sizes = [8, 128], strides = [1, 1]} : vector<8x256xf32> to vector<8x128xf32>
    %71 = arith.mulf %68, %70 : vector<8x128xf32>
    %72 = arith.addf %69, %71 : vector<8x128xf32>
    %73 = math.tanh %72 : vector<8x128xf32>
    %74 = arith.subf %73, %56 : vector<8x128xf32>
    %75 = vector.broadcast %58 : vector<8x1xf32> to vector<8x128xf32>
    %76 = arith.mulf %75, %74 : vector<8x128xf32>
    %77 = arith.addf %56, %76 : vector<8x128xf32>
    %c24 = arith.constant 24 : index
    %c0_28 = arith.constant 0 : index
    %78 = vector.load %arg8[%c24, %c0_28] : memref<64x256xf32, #tpu.memory_space<vmem>>, vector<8x256xf32>
    %79 = vector.extract_strided_slice %13 {offsets = [0, 3], sizes = [8, 1], strides = [1, 1]} : vector<8x8xf32> to vector<8x1xf32>
    %80 = arith.truncf %77 : vector<8x128xf32> to vector<8x128xbf16>
    %cst_29 = arith.constant dense<0.000000e+00> : vector<8x256xf32>
    %81 = tpu.matmul %80, %11, %cst_29 {dimension_numbers = #tpu.dot_dimension_numbers<[1], [0], [0], [1], [0, 0, 1, 1], [], []>} : vector<8x128xbf16>, vector<128x256xbf16>, vector<8x256xf32> -> vector<8x256xf32>
    %82 = vector.extract_strided_slice %78 {offsets = [0, 0], sizes = [8, 128], strides = [1, 1]} : vector<8x256xf32> to vector<8x128xf32>
    %83 = vector.extract_strided_slice %81 {offsets = [0, 0], sizes = [8, 128], strides = [1, 1]} : vector<8x256xf32> to vector<8x128xf32>
    %84 = arith.addf %82, %83 : vector<8x128xf32>
    %85 = arith.negf %84 : vector<8x128xf32>
    %86 = math.exp %85 : vector<8x128xf32>
    %cst_30 = arith.constant 1.000000e+00 : f32
    %87 = vector.broadcast %cst_30 : f32 to vector<8x128xf32>
    %88 = arith.addf %87, %86 : vector<8x128xf32>
    %89 = arith.divf %87, %88 : vector<8x128xf32>
    %90 = vector.extract_strided_slice %78 {offsets = [0, 128], sizes = [8, 128], strides = [1, 1]} : vector<8x256xf32> to vector<8x128xf32>
    %91 = vector.extract_strided_slice %81 {offsets = [0, 128], sizes = [8, 128], strides = [1, 1]} : vector<8x256xf32> to vector<8x128xf32>
    %92 = arith.mulf %89, %91 : vector<8x128xf32>
    %93 = arith.addf %90, %92 : vector<8x128xf32>
    %94 = math.tanh %93 : vector<8x128xf32>
    %95 = arith.subf %94, %77 : vector<8x128xf32>
    %96 = vector.broadcast %79 : vector<8x1xf32> to vector<8x128xf32>
    %97 = arith.mulf %96, %95 : vector<8x128xf32>
    %98 = arith.addf %77, %97 : vector<8x128xf32>
    %c32 = arith.constant 32 : index
    %c0_31 = arith.constant 0 : index
    %99 = vector.load %arg8[%c32, %c0_31] : memref<64x256xf32, #tpu.memory_space<vmem>>, vector<8x256xf32>
    %100 = vector.extract_strided_slice %13 {offsets = [0, 4], sizes = [8, 1], strides = [1, 1]} : vector<8x8xf32> to vector<8x1xf32>
    %101 = arith.truncf %98 : vector<8x128xf32> to vector<8x128xbf16>
    %cst_32 = arith.constant dense<0.000000e+00> : vector<8x256xf32>
    %102 = tpu.matmul %101, %11, %cst_32 {dimension_numbers = #tpu.dot_dimension_numbers<[1], [0], [0], [1], [0, 0, 1, 1], [], []>} : vector<8x128xbf16>, vector<128x256xbf16>, vector<8x256xf32> -> vector<8x256xf32>
    %103 = vector.extract_strided_slice %99 {offsets = [0, 0], sizes = [8, 128], strides = [1, 1]} : vector<8x256xf32> to vector<8x128xf32>
    %104 = vector.extract_strided_slice %102 {offsets = [0, 0], sizes = [8, 128], strides = [1, 1]} : vector<8x256xf32> to vector<8x128xf32>
    %105 = arith.addf %103, %104 : vector<8x128xf32>
    %106 = arith.negf %105 : vector<8x128xf32>
    %107 = math.exp %106 : vector<8x128xf32>
    %cst_33 = arith.constant 1.000000e+00 : f32
    %108 = vector.broadcast %cst_33 : f32 to vector<8x128xf32>
    %109 = arith.addf %108, %107 : vector<8x128xf32>
    %110 = arith.divf %108, %109 : vector<8x128xf32>
    %111 = vector.extract_strided_slice %99 {offsets = [0, 128], sizes = [8, 128], strides = [1, 1]} : vector<8x256xf32> to vector<8x128xf32>
    %112 = vector.extract_strided_slice %102 {offsets = [0, 128], sizes = [8, 128], strides = [1, 1]} : vector<8x256xf32> to vector<8x128xf32>
    %113 = arith.mulf %110, %112 : vector<8x128xf32>
    %114 = arith.addf %111, %113 : vector<8x128xf32>
    %115 = math.tanh %114 : vector<8x128xf32>
    %116 = arith.subf %115, %98 : vector<8x128xf32>
    %117 = vector.broadcast %100 : vector<8x1xf32> to vector<8x128xf32>
    %118 = arith.mulf %117, %116 : vector<8x128xf32>
    %119 = arith.addf %98, %118 : vector<8x128xf32>
    %c40 = arith.constant 40 : index
    %c0_34 = arith.constant 0 : index
    %120 = vector.load %arg8[%c40, %c0_34] : memref<64x256xf32, #tpu.memory_space<vmem>>, vector<8x256xf32>
    %121 = vector.extract_strided_slice %13 {offsets = [0, 5], sizes = [8, 1], strides = [1, 1]} : vector<8x8xf32> to vector<8x1xf32>
    %122 = arith.truncf %119 : vector<8x128xf32> to vector<8x128xbf16>
    %cst_35 = arith.constant dense<0.000000e+00> : vector<8x256xf32>
    %123 = tpu.matmul %122, %11, %cst_35 {dimension_numbers = #tpu.dot_dimension_numbers<[1], [0], [0], [1], [0, 0, 1, 1], [], []>} : vector<8x128xbf16>, vector<128x256xbf16>, vector<8x256xf32> -> vector<8x256xf32>
    %124 = vector.extract_strided_slice %120 {offsets = [0, 0], sizes = [8, 128], strides = [1, 1]} : vector<8x256xf32> to vector<8x128xf32>
    %125 = vector.extract_strided_slice %123 {offsets = [0, 0], sizes = [8, 128], strides = [1, 1]} : vector<8x256xf32> to vector<8x128xf32>
    %126 = arith.addf %124, %125 : vector<8x128xf32>
    %127 = arith.negf %126 : vector<8x128xf32>
    %128 = math.exp %127 : vector<8x128xf32>
    %cst_36 = arith.constant 1.000000e+00 : f32
    %129 = vector.broadcast %cst_36 : f32 to vector<8x128xf32>
    %130 = arith.addf %129, %128 : vector<8x128xf32>
    %131 = arith.divf %129, %130 : vector<8x128xf32>
    %132 = vector.extract_strided_slice %120 {offsets = [0, 128], sizes = [8, 128], strides = [1, 1]} : vector<8x256xf32> to vector<8x128xf32>
    %133 = vector.extract_strided_slice %123 {offsets = [0, 128], sizes = [8, 128], strides = [1, 1]} : vector<8x256xf32> to vector<8x128xf32>
    %134 = arith.mulf %131, %133 : vector<8x128xf32>
    %135 = arith.addf %132, %134 : vector<8x128xf32>
    %136 = math.tanh %135 : vector<8x128xf32>
    %137 = arith.subf %136, %119 : vector<8x128xf32>
    %138 = vector.broadcast %121 : vector<8x1xf32> to vector<8x128xf32>
    %139 = arith.mulf %138, %137 : vector<8x128xf32>
    %140 = arith.addf %119, %139 : vector<8x128xf32>
    %c48 = arith.constant 48 : index
    %c0_37 = arith.constant 0 : index
    %141 = vector.load %arg8[%c48, %c0_37] : memref<64x256xf32, #tpu.memory_space<vmem>>, vector<8x256xf32>
    %142 = vector.extract_strided_slice %13 {offsets = [0, 6], sizes = [8, 1], strides = [1, 1]} : vector<8x8xf32> to vector<8x1xf32>
    %143 = arith.truncf %140 : vector<8x128xf32> to vector<8x128xbf16>
    %cst_38 = arith.constant dense<0.000000e+00> : vector<8x256xf32>
    %144 = tpu.matmul %143, %11, %cst_38 {dimension_numbers = #tpu.dot_dimension_numbers<[1], [0], [0], [1], [0, 0, 1, 1], [], []>} : vector<8x128xbf16>, vector<128x256xbf16>, vector<8x256xf32> -> vector<8x256xf32>
    %145 = vector.extract_strided_slice %141 {offsets = [0, 0], sizes = [8, 128], strides = [1, 1]} : vector<8x256xf32> to vector<8x128xf32>
    %146 = vector.extract_strided_slice %144 {offsets = [0, 0], sizes = [8, 128], strides = [1, 1]} : vector<8x256xf32> to vector<8x128xf32>
    %147 = arith.addf %145, %146 : vector<8x128xf32>
    %148 = arith.negf %147 : vector<8x128xf32>
    %149 = math.exp %148 : vector<8x128xf32>
    %cst_39 = arith.constant 1.000000e+00 : f32
    %150 = vector.broadcast %cst_39 : f32 to vector<8x128xf32>
    %151 = arith.addf %150, %149 : vector<8x128xf32>
    %152 = arith.divf %150, %151 : vector<8x128xf32>
    %153 = vector.extract_strided_slice %141 {offsets = [0, 128], sizes = [8, 128], strides = [1, 1]} : vector<8x256xf32> to vector<8x128xf32>
    %154 = vector.extract_strided_slice %144 {offsets = [0, 128], sizes = [8, 128], strides = [1, 1]} : vector<8x256xf32> to vector<8x128xf32>
    %155 = arith.mulf %152, %154 : vector<8x128xf32>
    %156 = arith.addf %153, %155 : vector<8x128xf32>
    %157 = math.tanh %156 : vector<8x128xf32>
    %158 = arith.subf %157, %140 : vector<8x128xf32>
    %159 = vector.broadcast %142 : vector<8x1xf32> to vector<8x128xf32>
    %160 = arith.mulf %159, %158 : vector<8x128xf32>
    %161 = arith.addf %140, %160 : vector<8x128xf32>
    %c56 = arith.constant 56 : index
    %c0_40 = arith.constant 0 : index
    %162 = vector.load %arg8[%c56, %c0_40] : memref<64x256xf32, #tpu.memory_space<vmem>>, vector<8x256xf32>
    %163 = vector.extract_strided_slice %13 {offsets = [0, 7], sizes = [8, 1], strides = [1, 1]} : vector<8x8xf32> to vector<8x1xf32>
    %164 = arith.truncf %161 : vector<8x128xf32> to vector<8x128xbf16>
    %cst_41 = arith.constant dense<0.000000e+00> : vector<8x256xf32>
    %165 = tpu.matmul %164, %11, %cst_41 {dimension_numbers = #tpu.dot_dimension_numbers<[1], [0], [0], [1], [0, 0, 1, 1], [], []>} : vector<8x128xbf16>, vector<128x256xbf16>, vector<8x256xf32> -> vector<8x256xf32>
    %166 = vector.extract_strided_slice %162 {offsets = [0, 0], sizes = [8, 128], strides = [1, 1]} : vector<8x256xf32> to vector<8x128xf32>
    %167 = vector.extract_strided_slice %165 {offsets = [0, 0], sizes = [8, 128], strides = [1, 1]} : vector<8x256xf32> to vector<8x128xf32>
    %168 = arith.addf %166, %167 : vector<8x128xf32>
    %169 = arith.negf %168 : vector<8x128xf32>
    %170 = math.exp %169 : vector<8x128xf32>
    %cst_42 = arith.constant 1.000000e+00 : f32
    %171 = vector.broadcast %cst_42 : f32 to vector<8x128xf32>
    %172 = arith.addf %171, %170 : vector<8x128xf32>
    %173 = arith.divf %171, %172 : vector<8x128xf32>
    %174 = vector.extract_strided_slice %162 {offsets = [0, 128], sizes = [8, 128], strides = [1, 1]} : vector<8x256xf32> to vector<8x128xf32>
    %175 = vector.extract_strided_slice %165 {offsets = [0, 128], sizes = [8, 128], strides = [1, 1]} : vector<8x256xf32> to vector<8x128xf32>
    %176 = arith.mulf %173, %175 : vector<8x128xf32>
    %177 = arith.addf %174, %176 : vector<8x128xf32>
    %178 = math.tanh %177 : vector<8x128xf32>
    %179 = arith.subf %178, %161 : vector<8x128xf32>
    %180 = vector.broadcast %163 : vector<8x1xf32> to vector<8x128xf32>
    %181 = arith.mulf %180, %179 : vector<8x128xf32>
    %182 = arith.addf %161, %181 : vector<8x128xf32>
    %c0_43 = arith.constant 0 : index
    %c0_44 = arith.constant 0 : index
    %183 = vector.load %arg7[%c0_43, %c0_44] : memref<8x128xf32, #tpu.memory_space<vmem>>, vector<8x128xf32>
    tpu.vector_store %arg7[%c0_43, %c0_44], %182 {strides = array<i32>} : memref<8x128xf32, #tpu.memory_space<vmem>>, vector<8x128xf32>,
    return
  }
  func.func @transform_0(%arg0: i32, %arg1: i32) -> (i32, i32, i32, i32) {
    %c0_i32 = arith.constant 0 : i32
    %c0_i32_0 = arith.constant 0 : i32
    %c0_i32_1 = arith.constant 0 : i32
    return %arg0, %arg1, %c0_i32, %c0_i32_0 : i32, i32, i32, i32
  }
  func.func @transform_1(%arg0: i32, %arg1: i32) -> (i32, i32, i32, i32) {
    %c0_i32 = arith.constant 0 : i32
    %c0_i32_0 = arith.constant 0 : i32
    %c0_i32_1 = arith.constant 0 : i32
    return %arg0, %arg1, %c0_i32, %c0_i32_0 : i32, i32, i32, i32
  }
  func.func @transform_2(%arg0: i32, %arg1: i32) -> (i32, i32) {
    %c0_i32 = arith.constant 0 : i32
    %c0_i32_0 = arith.constant 0 : i32
    %c0_i32_1 = arith.constant 0 : i32
    return %c0_i32, %c0_i32_0 : i32, i32
  }
  func.func @transform_3(%arg0: i32, %arg1: i32) -> (i32, i32) {
    %c0_i32 = arith.constant 0 : i32
    %c0_i32_0 = arith.constant 0 : i32
    %c0_i32_1 = arith.constant 0 : i32
    return %c0_i32, %c0_i32_0 : i32, i32
  }
  func.func @transform_4(%arg0: i32, %arg1: i32) -> (i32, i32) {
    %c0_i32 = arith.constant 0 : i32
    %c0_i32_0 = arith.constant 0 : i32
    %c0_i32_1 = arith.constant 0 : i32
    return %c0_i32, %c0_i32_0 : i32, i32
  }
  func.func @transform_5(%arg0: i32, %arg1: i32) -> (i32, i32) {
    %c0_i32 = arith.constant 0 : i32
    %c0_i32_0 = arith.constant 0 : i32
    return %arg0, %c0_i32 : i32, i32
  }
}

</mosaic_0001>

<llo_original>
// kernel: attention_gru.1
$region0: #{attention_gru.1}
  #allocation0 [shape = 'u32[]', space=smem, size = 0x4, offset = 0x4, fixed_abs, tag = 'smem constant byte address 0x4 - core index']
  #allocation1 [shape = 'u32[144,128]{1,0:T(1,128)}', space=vmem, size = 0x12000, scoped, tag = 'internal scratch']
  #allocation2 [shape = 'f32[64,256]{1,0:T(8,128)}', space=vmem, size = 0x10000, scoped, tag = 'scratch operand']
  %s0 = inlined_call_operand.vmem [shape: bf16[1,1,64,32], index: 0, kind: input, shape index: {}]
  %s1 = inlined_call_operand.vmem [shape: f32[1,1,8,8], index: 1, kind: input, shape index: {}]
  %s2 = inlined_call_operand.vmem [shape: bf16[32,256], index: 2, kind: input, shape index: {}]
  %s3 = inlined_call_operand.vmem [shape: bf16[128,256], index: 3, kind: input, shape index: {}]
  %s4 = inlined_call_operand.vmem [shape: f32[1,256], index: 4, kind: input, shape index: {}]
  %s5 = inlined_call_operand.vmem [shape: f32[8,128], index: 5, kind: output, shape index: {}]
  %s6 = sld [smem:[#allocation0]]
  $region34: #{attention_gru.1} parent=0
    _
  %s8 = ssub.s32 1, %s6
  %s9 = scalar_select 0, %s8, %s6
  // Predicated region
  $region2: #{attention_gru.1} parent=0 // pred_check
    _
  $region3: #{attention_gru.1} parent=0 // pred_check_branch
    %11 = sbr.rel (0) target = $region5
  $region4: #{attention_gru.1} parent=0 // pred_region
    _
  $region5: #{attention_gru.1} parent=0 // pred_fallthru
    _
  // Predicated region
  $region6: #{attention_gru.1} parent=0 // pred_check
    _
  $region7: #{attention_gru.1} parent=0 // pred_check_branch
    %13 = sbr.rel (0) target = $region9
  $region8: #{attention_gru.1} parent=0 // pred_region
    _
  $region9: #{attention_gru.1} parent=0 // pred_fallthru
    _
  // Predicated region
  $region10: #{attention_gru.1} parent=0 // pred_check
    _
  $region11: #{attention_gru.1} parent=0 // pred_check_branch
    %15 = sbr.rel (0) target = $region13
  $region12: #{attention_gru.1} parent=0 // pred_region
    _
  $region13: #{attention_gru.1} parent=0 // pred_fallthru
    _
  // Predicated region
  $region14: #{attention_gru.1} parent=0 // pred_check
    _
  $region15: #{attention_gru.1} parent=0 // pred_check_branch
    %17 = sbr.rel (0) target = $region17
  $region16: #{attention_gru.1} parent=0 // pred_region
    _
  $region17: #{attention_gru.1} parent=0 // pred_fallthru
    _
  // Predicated region
  $region18: #{attention_gru.1} parent=0 // pred_check
    _
  $region19: #{attention_gru.1} parent=0 // pred_check_branch
    %19 = sbr.rel (0) target = $region21
  $region20: #{attention_gru.1} parent=0 // pred_region
    _
  $region21: #{attention_gru.1} parent=0 // pred_fallthru
    _
  %p21 = scmp.eq.s32.totalorder 0, 0
  // Predicated region
  $region22: #{attention_gru.1} parent=0 // pred_check
    %p22 = pneg %p21
  $region23: #{attention_gru.1} parent=0 // pred_check_branch
    %24 = sbr.rel (%p22) target = $region25
  $region24: #{attention_gru.1} parent=0 // pred_region
    %25 = vst [vmem:[%s5] sm:$0xff] 0.0
  $region25: #{attention_gru.1} parent=0 // pred_fallthru
    _
  %v26 = vld [vmem:[%s0] sm:$0xf]
  %v27 = vld [vmem:[%s0 + $0x4] sm:$0xf]
  %v28 = vld [vmem:[%s0 + $0x8] sm:$0xf]
  %v29 = vld [vmem:[%s0 + $0xc] sm:$0xf]
  %v30 = vld [vmem:[%s0 + $0x10] sm:$0xf]
  %v31 = vld [vmem:[%s0 + $0x14] sm:$0xf]
  %v32 = vld [vmem:[%s0 + $0x18] sm:$0xf]
  %v33 = vld [vmem:[%s0 + $0x1c] sm:$0xf]
  %v34 = vld [vmem:[%s2] sm:$0xff]
  %v35 = vld [vmem:[%s2 + $0x8] sm:$0xff]
  %v36 = vld [vmem:[%s2 + $0x10] sm:$0xff]
  %v37 = vld [vmem:[%s2 + $0x18] sm:$0xff]
  %v38 = vld [vmem:[%s4] sm:$0x3]
  %v40 = vlaneseq
  %v41 = vshrl.u32 %v40, 7
  %v42 = vsub.s32 0, %v41
  %v43 = vrot.slane %v38, %v42
  %v44 = vlaneseq
  %v45 = vshrl.u32 %v44, 7
  %v46 = vsub.s32 1, %v45
  %v47 = vrot.slane %v38, %v46
  %v58 = vunpack.c.l.b16 %v26
  %v59 = vunpack.c.l.b16 %v27
  %v60 = vunpack.c.l.b16 %v28
  %v61 = vunpack.c.l.b16 %v29
  %v62 = vunpack.c.l.b16 %v30
  %v63 = vunpack.c.l.b16 %v31
  %v64 = vunpack.c.l.b16 %v32
  %v65 = vunpack.c.l.b16 %v33
  %v66 = vpack.c.b16 %v59, %v58
  %v67 = vpack.c.b16 %v61, %v60
  %v68 = vpack.c.b16 %v63, %v62
  %v69 = vpack.c.b16 %v65, %v64
  %v74 = vunpack.c.l.b16 %v34
  %v75 = vunpack.c.h.b16 %v34
  %v76 = vunpack.c.l.b16 %v35
  %v77 = vunpack.c.h.b16 %v35
  %v78 = vunpack.c.l.b16 %v36
  %v79 = vunpack.c.h.b16 %v36
  %v80 = vunpack.c.l.b16 %v37
  %v81 = vunpack.c.h.b16 %v37
  %v82 = vpack.c.b16 %v76, %v74
  %v83 = vpack.c.b16 %v77, %v75
  %v84 = vpack.c.b16 %v80, %v78
  %v85 = vpack.c.b16 %v81, %v79
  %vm90 = vcmask 261120
  %v92 = vsel %vm90, %v66, 0
  %v95 = vsel %vm90, %v67, 0
  %v98 = vsel %vm90, %v68, 0
  %v101 = vsel %vm90, %v69, 0
  %103 = vmatprep.subr.bf16.mxu0 0
  %104 = vmatpush1.bf16.msra.mxu0 0
  %105 = vmatprep.subr.bf16.mxu0 0
  %106 = vmatpush1.bf16.msra.mxu0 0
  %107 = vmatprep.subr.bf16.mxu0 0
  %108 = vmatpush1.bf16.msra.mxu0 0
  %109 = vmatprep.subr.bf16.mxu0 0
  %110 = vmatpush1.bf16.msra.mxu0 0
  %111 = vmatprep.subr.bf16.mxu0 0
  %112 = vmatpush1.bf16.msra.mxu0 0
  %113 = vmatprep.subr.bf16.mxu0 0
  %114 = vmatpush1.bf16.msra.mxu0 0
  %115 = vmatprep.subr.bf16.mxu0 %v85
  %116 = vmatpush1.bf16.msra.mxu0 %v84
  %117 = vmatprep.subr.bf16.mxu0 %v83
  %118 = vmatpush1.bf16.msra.mxu0 %v82
  %119 = vmatprep.subr.bf16.mxu0 0
  %120 = vmatpush2.bf16.msra.mxu0 0
  %121 = vmatprep.subr.bf16.mxu0 0
  %122 = vmatpush2.bf16.msra.mxu0 0
  %123 = vmatprep.subr.bf16.mxu0 0
  %124 = vmatpush2.bf16.msra.mxu0 0
  %125 = vmatprep.subr.bf16.mxu0 0
  %126 = vmatpush2.bf16.msra.mxu0 0
  %127 = vmatprep.subr.bf16.mxu0 0
  %128 = vmatpush2.bf16.msra.mxu0 0
  %129 = vmatprep.subr.bf16.mxu0 0
  %130 = vmatpush2.bf16.msra.mxu0 0
  %131 = vmatprep.subr.bf16.mxu0 0
  %132 = vmatpush2.bf16.msra.mxu0 0
  %133 = vmatprep.subr.bf16.mxu0 0
  %134 = vmatpush2.bf16.msra.mxu0 0
  %135 = vmatprep.mubr.bf16.mxu0 0
  %136 = vmatmul.mubr.bf16.gmra.mxu0 %v92
  %v137 = vpop.f32.mrf.mxu0
  %v138 = vadd.f32 %v43, %v137
  %v139 = vpop.f32.mrf.mxu0
  %v140 = vadd.f32 %v47, %v139
  %v141 = vpop.f32.mrf.mxu0
  %v142 = vadd.f32 %v43, %v141
  %v143 = vpop.f32.mrf.mxu0
  %v144 = vadd.f32 %v47, %v143
  %145 = vmatprep.mubr.bf16.mxu0 0
  %146 = vmatmul.mubr.bf16.gmra.mxu0 %v95
  %v147 = vpop.f32.mrf.mxu0
  %v148 = vadd.f32 %v43, %v147
  %v149 = vpop.f32.mrf.mxu0
  %v150 = vadd.f32 %v47, %v149
  %v151 = vpop.f32.mrf.mxu0
  %v152 = vadd.f32 %v43, %v151
  %v153 = vpop.f32.mrf.mxu0
  %v154 = vadd.f32 %v47, %v153
  %155 = vmatprep.mubr.bf16.mxu0 0
  %156 = vmatmul.mubr.bf16.gmra.mxu0 %v98
  %v157 = vpop.f32.mrf.mxu0
  %v158 = vadd.f32 %v43, %v157
  %v159 = vpop.f32.mrf.mxu0
  %v160 = vadd.f32 %v47, %v159
  %v161 = vpop.f32.mrf.mxu0
  %v162 = vadd.f32 %v43, %v161
  %v163 = vpop.f32.mrf.mxu0
  %v164 = vadd.f32 %v47, %v163
  %165 = vmatprep.mubr.bf16.mxu0 0
  %166 = vmatmul.mubr.bf16.gmra.mxu0 %v101
  %v167 = vpop.f32.mrf.mxu0
  %v168 = vadd.f32 %v43, %v167
  %v169 = vpop.f32.mrf.mxu0
  %v170 = vadd.f32 %v47, %v169
  %v171 = vpop.f32.mrf.mxu0
  %v172 = vadd.f32 %v43, %v171
  %v173 = vpop.f32.mrf.mxu0
  %v174 = vadd.f32 %v47, %v173
  %175 = vdwg.mxu0
  %176 = vst [vmem:[#allocation2] sm:$0xff] %v138
  %177 = vst [vmem:[#allocation2 + $0x8] sm:$0xff] %v140
  %178 = vst [vmem:[#allocation2 + $0x10] sm:$0xff] %v142
  %179 = vst [vmem:[#allocation2 + $0x18] sm:$0xff] %v144
  %180 = vst [vmem:[#allocation2 + $0x20] sm:$0xff] %v148
  %181 = vst [vmem:[#allocation2 + $0x28] sm:$0xff] %v150
  %182 = vst [vmem:[#allocation2 + $0x30] sm:$0xff] %v152
  %183 = vst [vmem:[#allocation2 + $0x38] sm:$0xff] %v154
  %184 = vst [vmem:[#allocation2 + $0x40] sm:$0xff] %v158
  %185 = vst [vmem:[#allocation2 + $0x48] sm:$0xff] %v160
  %186 = vst [vmem:[#allocation2 + $0x50] sm:$0xff] %v162
  %187 = vst [vmem:[#allocation2 + $0x58] sm:$0xff] %v164
  %188 = vst [vmem:[#allocation2 + $0x60] sm:$0xff] %v168
  %189 = vst [vmem:[#allocation2 + $0x68] sm:$0xff] %v170
  %190 = vst [vmem:[#allocation2 + $0x70] sm:$0xff] %v172
  %191 = vst [vmem:[#allocation2 + $0x78] sm:$0xff] %v174
  %v192 = vld [vmem:[%s3] sm:$0xff]
  %v193 = vld [vmem:[%s3 + $0x8] sm:$0xff]
  %v194 = vld [vmem:[%s3 + $0x10] sm:$0xff]
  %v195 = vld [vmem:[%s3 + $0x18] sm:$0xff]
  %v196 = vld [vmem:[%s3 + $0x20] sm:$0xff]
  %v197 = vld [vmem:[%s3 + $0x28] sm:$0xff]
  %v198 = vld [vmem:[%s3 + $0x30] sm:$0xff]
  %v199 = vld [vmem:[%s3 + $0x38] sm:$0xff]
  %v200 = vld [vmem:[%s3 + $0x40] sm:$0xff]
  %v201 = vld [vmem:[%s3 + $0x48] sm:$0xff]
  %v202 = vld [vmem:[%s3 + $0x50] sm:$0xff]
  %v203 = vld [vmem:[%s3 + $0x58] sm:$0xff]
  %v204 = vld [vmem:[%s3 + $0x60] sm:$0xff]
  %v205 = vld [vmem:[%s3 + $0x68] sm:$0xff]
  %v206 = vld [vmem:[%s3 + $0x70] sm:$0xff]
  %v207 = vld [vmem:[%s3 + $0x78] sm:$0xff]
  %v208 = vld [vmem:[%s1] sm:$0xff]
  %v209 = vld [vmem:[%s5] sm:$0xff]
  %v210 = vld [vmem:[#allocation2] sm:$0xff]
  %v211 = vld [vmem:[#allocation2 + $0x8] sm:$0xff]
  %v212 = vpack.c.bf16 %v209, %v209
  %v229 = vunpack.c.l.b16 %v192
  %v230 = vunpack.c.h.b16 %v192
  %v231 = vunpack.c.l.b16 %v193
  %v232 = vunpack.c.h.b16 %v193
  %v233 = vunpack.c.l.b16 %v194
  %v234 = vunpack.c.h.b16 %v194
  %v235 = vunpack.c.l.b16 %v195
  %v236 = vunpack.c.h.b16 %v195
  %v237 = vunpack.c.l.b16 %v196
  %v238 = vunpack.c.h.b16 %v196
  %v239 = vunpack.c.l.b16 %v197
  %v240 = vunpack.c.h.b16 %v197
  %v241 = vunpack.c.l.b16 %v198
  %v242 = vunpack.c.h.b16 %v198
  %v243 = vunpack.c.l.b16 %v199
  %v244 = vunpack.c.h.b16 %v199
  %v245 = vunpack.c.l.b16 %v200
  %v246 = vunpack.c.h.b16 %v200
  %v247 = vunpack.c.l.b16 %v201
  %v248 = vunpack.c.h.b16 %v201
  %v249 = vunpack.c.l.b16 %v202
  %v250 = vunpack.c.h.b16 %v202
  %v251 = vunpack.c.l.b16 %v203
  %v252 = vunpack.c.h.b16 %v203
  %v253 = vunpack.c.l.b16 %v204
  %v254 = vunpack.c.h.b16 %v204
  %v255 = vunpack.c.l.b16 %v205
  %v256 = vunpack.c.h.b16 %v205
  %v257 = vunpack.c.l.b16 %v206
  %v258 = vunpack.c.h.b16 %v206
  %v259 = vunpack.c.l.b16 %v207
  %v260 = vunpack.c.h.b16 %v207
  %v261 = vpack.c.b16 %v231, %v229
  %v262 = vpack.c.b16 %v232, %v230
  %v263 = vpack.c.b16 %v235, %v233
  %v264 = vpack.c.b16 %v236, %v234
  %v265 = vpack.c.b16 %v239, %v237
  %v266 = vpack.c.b16 %v240, %v238
  %v267 = vpack.c.b16 %v243, %v241
  %v268 = vpack.c.b16 %v244, %v242
  %v269 = vpack.c.b16 %v247, %v245
  %v270 = vpack.c.b16 %v248, %v246
  %v271 = vpack.c.b16 %v251, %v249
  %v272 = vpack.c.b16 %v252, %v250
  %v273 = vpack.c.b16 %v255, %v253
  %v274 = vpack.c.b16 %v256, %v254
  %v275 = vpack.c.b16 %v259, %v257
  %v276 = vpack.c.b16 %v260, %v258
  %293 = vmatprep.subr.bf16.mxu0 %v276
  %294 = vmatpush1.bf16.msra.mxu0 %v275
  %295 = vmatprep.subr.bf16.mxu0 %v274
  %296 = vmatpush1.bf16.msra.mxu0 %v273
  %297 = vmatprep.subr.bf16.mxu0 %v272
  %298 = vmatpush1.bf16.msra.mxu0 %v271
  %299 = vmatprep.subr.bf16.mxu0 %v270
  %300 = vmatpush1.bf16.msra.mxu0 %v269
  %301 = vmatprep.subr.bf16.mxu0 %v268
  %302 = vmatpush1.bf16.msra.mxu0 %v267
  %303 = vmatprep.subr.bf16.mxu0 %v266
  %304 = vmatpush1.bf16.msra.mxu0 %v265
  %305 = vmatprep.subr.bf16.mxu0 %v264
  %306 = vmatpush1.bf16.msra.mxu0 %v263
  %307 = vmatprep.subr.bf16.mxu0 %v262
  %308 = vmatpush1.bf16.msra.mxu0 %v261
  %309 = vmatprep.subr.bf16.mxu0 0
  %310 = vmatpush2.bf16.msra.mxu0 0
  %311 = vmatprep.subr.bf16.mxu0 0
  %312 = vmatpush2.bf16.msra.mxu0 0
  %313 = vmatprep.subr.bf16.mxu0 0
  %314 = vmatpush2.bf16.msra.mxu0 0
  %315 = vmatprep.subr.bf16.mxu0 0
  %316 = vmatpush2.bf16.msra.mxu0 0
  %317 = vmatprep.subr.bf16.mxu0 0
  %318 = vmatpush2.bf16.msra.mxu0 0
  %319 = vmatprep.subr.bf16.mxu0 0
  %320 = vmatpush2.bf16.msra.mxu0 0
  %321 = vmatprep.subr.bf16.mxu0 0
  %322 = vmatpush2.bf16.msra.mxu0 0
  %323 = vmatprep.subr.bf16.mxu0 0
  %324 = vmatpush2.bf16.msra.mxu0 0
  %325 = vmatprep.mubr.bf16.mxu0 0
  %326 = vmatmul.mubr.bf16.gmra.mxu0 %v212
  %v327 = vpop.f32.mrf.mxu0
  %v328 = vadd.f32 0.0, %v327
  %v329 = vpop.f32.mrf.mxu0
  %v330 = vadd.f32 0.0, %v329
  %v331 = vpop.f32.mrf.mxu0
  %v332 = vpop.f32.mrf.mxu0
  %333 = vdwg.mxu0
  %v334 = vadd.f32 %v210, %v328
  %v335 = vxor.u32 %v334, 2147483648
  %v336 = vmul.f32 %v335, 1.442695
  %v337 = vpow.pop %v336
  %v338 = vadd.f32 %v337, 1.0
  %v339 = vrcp.pop %v338
  %v340 = vmul.f32 1.0, %v339
  %v341 = vmul.f32 %v340, %v330
  %v342 = vadd.f32 %v211, %v341
  %v343 = vtanh.pop %v342
  %v344 = vsub.f32 %v343, %v209
  %346 = vset.pattern.permute.xlu0 0
  %347 = vperm.xlu0 %346, %v208
  %v348 = vpop.permute.xlu0 %347
  %v350 = vmul.f32 %v348, %v344
  %v351 = vadd.f32 %v209, %v350
  %v352 = vld [vmem:[#allocation2 + $0x10] sm:$0xff]
  %v353 = vld [vmem:[#allocation2 + $0x18] sm:$0xff]
  %v354 = vpack.c.bf16 %v351, %v351
  %355 = vmatprep.subr.bf16.mxu0 %v276
  %356 = vmatpush1.bf16.msra.mxu0 %v275
  %357 = vmatprep.subr.bf16.mxu0 %v274
  %358 = vmatpush1.bf16.msra.mxu0 %v273
  %359 = vmatprep.subr.bf16.mxu0 %v272
  %360 = vmatpush1.bf16.msra.mxu0 %v271
  %361 = vmatprep.subr.bf16.mxu0 %v270
  %362 = vmatpush1.bf16.msra.mxu0 %v269
  %363 = vmatprep.subr.bf16.mxu0 %v268
  %364 = vmatpush1.bf16.msra.mxu0 %v267
  %365 = vmatprep.subr.bf16.mxu0 %v266
  %366 = vmatpush1.bf16.msra.mxu0 %v265
  %367 = vmatprep.subr.bf16.mxu0 %v264
  %368 = vmatpush1.bf16.msra.mxu0 %v263
  %369 = vmatprep.subr.bf16.mxu0 %v262
  %370 = vmatpush1.bf16.msra.mxu0 %v261
  %371 = vmatprep.subr.bf16.mxu0 0
  %372 = vmatpush2.bf16.msra.mxu0 0
  %373 = vmatprep.subr.bf16.mxu0 0
  %374 = vmatpush2.bf16.msra.mxu0 0
  %375 = vmatprep.subr.bf16.mxu0 0
  %376 = vmatpush2.bf16.msra.mxu0 0
  %377 = vmatprep.subr.bf16.mxu0 0
  %378 = vmatpush2.bf16.msra.mxu0 0
  %379 = vmatprep.subr.bf16.mxu0 0
  %380 = vmatpush2.bf16.msra.mxu0 0
  %381 = vmatprep.subr.bf16.mxu0 0
  %382 = vmatpush2.bf16.msra.mxu0 0
  %383 = vmatprep.subr.bf16.mxu0 0
  %384 = vmatpush2.bf16.msra.mxu0 0
  %385 = vmatprep.subr.bf16.mxu0 0
  %386 = vmatpush2.bf16.msra.mxu0 0
  %387 = vmatprep.mubr.bf16.mxu0 0
  %388 = vmatmul.mubr.bf16.gmra.mxu0 %v354
  %v389 = vpop.f32.mrf.mxu0
  %v390 = vadd.f32 0.0, %v389
  %v391 = vpop.f32.mrf.mxu0
  %v392 = vadd.f32 0.0, %v391
  %v393 = vpop.f32.mrf.mxu0
  %v394 = vpop.f32.mrf.mxu0
  %395 = vdwg.mxu0
  %v396 = vadd.f32 %v352, %v390
  %v397 = vxor.u32 %v396, 2147483648
  %v398 = vmul.f32 %v397, 1.442695
  %v399 = vpow.pop %v398
  %v400 = vadd.f32 %v399, 1.0
  %v401 = vrcp.pop %v400
  %v402 = vmul.f32 1.0, %v401
  %v403 = vmul.f32 %v402, %v392
  %v404 = vadd.f32 %v353, %v403
  %v405 = vtanh.pop %v404
  %v406 = vsub.f32 %v405, %v351
  %407 = vset.pattern.permute.xlu0 1
  %408 = vperm.xlu0 %407, %v208
  %v409 = vpop.permute.xlu0 %408
  %v411 = vmul.f32 %v409, %v406
  %v412 = vadd.f32 %v351, %v411
  %v413 = vld [vmem:[#allocation2 + $0x20] sm:$0xff]
  %v414 = vld [vmem:[#allocation2 + $0x28] sm:$0xff]
  %v415 = vpack.c.bf16 %v412, %v412
  %416 = vmatprep.subr.bf16.mxu0 %v276
  %417 = vmatpush1.bf16.msra.mxu0 %v275
  %418 = vmatprep.subr.bf16.mxu0 %v274
  %419 = vmatpush1.bf16.msra.mxu0 %v273
  %420 = vmatprep.subr.bf16.mxu0 %v272
  %421 = vmatpush1.bf16.msra.mxu0 %v271
  %422 = vmatprep.subr.bf16.mxu0 %v270
  %423 = vmatpush1.bf16.msra.mxu0 %v269
  %424 = vmatprep.subr.bf16.mxu0 %v268
  %425 = vmatpush1.bf16.msra.mxu0 %v267
  %426 = vmatprep.subr.bf16.mxu0 %v266
  %427 = vmatpush1.bf16.msra.mxu0 %v265
  %428 = vmatprep.subr.bf16.mxu0 %v264
  %429 = vmatpush1.bf16.msra.mxu0 %v263
  %430 = vmatprep.subr.bf16.mxu0 %v262
  %431 = vmatpush1.bf16.msra.mxu0 %v261
  %432 = vmatprep.subr.bf16.mxu0 0
  %433 = vmatpush2.bf16.msra.mxu0 0
  %434 = vmatprep.subr.bf16.mxu0 0
  %435 = vmatpush2.bf16.msra.mxu0 0
  %436 = vmatprep.subr.bf16.mxu0 0
  %437 = vmatpush2.bf16.msra.mxu0 0
  %438 = vmatprep.subr.bf16.mxu0 0
  %439 = vmatpush2.bf16.msra.mxu0 0
  %440 = vmatprep.subr.bf16.mxu0 0
  %441 = vmatpush2.bf16.msra.mxu0 0
  %442 = vmatprep.subr.bf16.mxu0 0
  %443 = vmatpush2.bf16.msra.mxu0 0
  %444 = vmatprep.subr.bf16.mxu0 0
  %445 = vmatpush2.bf16.msra.mxu0 0
  %446 = vmatprep.subr.bf16.mxu0 0
  %447 = vmatpush2.bf16.msra.mxu0 0
  %448 = vmatprep.mubr.bf16.mxu0 0
  %449 = vmatmul.mubr.bf16.gmra.mxu0 %v415
  %v450 = vpop.f32.mrf.mxu0
  %v451 = vadd.f32 0.0, %v450
  %v452 = vpop.f32.mrf.mxu0
  %v453 = vadd.f32 0.0, %v452
  %v454 = vpop.f32.mrf.mxu0
  %v455 = vpop.f32.mrf.mxu0
  %456 = vdwg.mxu0
  %v457 = vadd.f32 %v413, %v451
  %v458 = vxor.u32 %v457, 2147483648
  %v459 = vmul.f32 %v458, 1.442695
  %v460 = vpow.pop %v459
  %v461 = vadd.f32 %v460, 1.0
  %v462 = vrcp.pop %v461
  %v463 = vmul.f32 1.0, %v462
  %v464 = vmul.f32 %v463, %v453
  %v465 = vadd.f32 %v414, %v464
  %v466 = vtanh.pop %v465
  %v467 = vsub.f32 %v466, %v412
  %468 = vset.pattern.permute.xlu0 2
  %469 = vperm.xlu0 %468, %v208
  %v470 = vpop.permute.xlu0 %469
  %v472 = vmul.f32 %v470, %v467
  %v473 = vadd.f32 %v412, %v472
  %v474 = vld [vmem:[#allocation2 + $0x30] sm:$0xff]
  %v475 = vld [vmem:[#allocation2 + $0x38] sm:$0xff]
  %v476 = vpack.c.bf16 %v473, %v473
  %477 = vmatprep.subr.bf16.mxu0 %v276
  %478 = vmatpush1.bf16.msra.mxu0 %v275
  %479 = vmatprep.subr.bf16.mxu0 %v274
  %480 = vmatpush1.bf16.msra.mxu0 %v273
  %481 = vmatprep.subr.bf16.mxu0 %v272
  %482 = vmatpush1.bf16.msra.mxu0 %v271
  %483 = vmatprep.subr.bf16.mxu0 %v270
  %484 = vmatpush1.bf16.msra.mxu0 %v269
  %485 = vmatprep.subr.bf16.mxu0 %v268
  %486 = vmatpush1.bf16.msra.mxu0 %v267
  %487 = vmatprep.subr.bf16.mxu0 %v266
  %488 = vmatpush1.bf16.msra.mxu0 %v265
  %489 = vmatprep.subr.bf16.mxu0 %v264
  %490 = vmatpush1.bf16.msra.mxu0 %v263
  %491 = vmatprep.subr.bf16.mxu0 %v262
  %492 = vmatpush1.bf16.msra.mxu0 %v261
  %493 = vmatprep.subr.bf16.mxu0 0
  %494 = vmatpush2.bf16.msra.mxu0 0
  %495 = vmatprep.subr.bf16.mxu0 0
  %496 = vmatpush2.bf16.msra.mxu0 0
  %497 = vmatprep.subr.bf16.mxu0 0
  %498 = vmatpush2.bf16.msra.mxu0 0
  %499 = vmatprep.subr.bf16.mxu0 0
  %500 = vmatpush2.bf16.msra.mxu0 0
  %501 = vmatprep.subr.bf16.mxu0 0
  %502 = vmatpush2.bf16.msra.mxu0 0
  %503 = vmatprep.subr.bf16.mxu0 0
  %504 = vmatpush2.bf16.msra.mxu0 0
  %505 = vmatprep.subr.bf16.mxu0 0
  %506 = vmatpush2.bf16.msra.mxu0 0
  %507 = vmatprep.subr.bf16.mxu0 0
  %508 = vmatpush2.bf16.msra.mxu0 0
  %509 = vmatprep.mubr.bf16.mxu0 0
  %510 = vmatmul.mubr.bf16.gmra.mxu0 %v476
  %v511 = vpop.f32.mrf.mxu0
  %v512 = vadd.f32 0.0, %v511
  %v513 = vpop.f32.mrf.mxu0
  %v514 = vadd.f32 0.0, %v513
  %v515 = vpop.f32.mrf.mxu0
  %v516 = vpop.f32.mrf.mxu0
  %517 = vdwg.mxu0
  %v518 = vadd.f32 %v474, %v512
  %v519 = vxor.u32 %v518, 2147483648
  %v520 = vmul.f32 %v519, 1.442695
  %v521 = vpow.pop %v520
  %v522 = vadd.f32 %v521, 1.0
  %v523 = vrcp.pop %v522
  %v524 = vmul.f32 1.0, %v523
  %v525 = vmul.f32 %v524, %v514
  %v526 = vadd.f32 %v475, %v525
  %v527 = vtanh.pop %v526
  %v528 = vsub.f32 %v527, %v473
  %529 = vset.pattern.permute.xlu0 3
  %530 = vperm.xlu0 %529, %v208
  %v531 = vpop.permute.xlu0 %530
  %v533 = vmul.f32 %v531, %v528
  %v534 = vadd.f32 %v473, %v533
  %v535 = vld [vmem:[#allocation2 + $0x40] sm:$0xff]
  %v536 = vld [vmem:[#allocation2 + $0x48] sm:$0xff]
  %v537 = vpack.c.bf16 %v534, %v534
  %538 = vmatprep.subr.bf16.mxu0 %v276
  %539 = vmatpush1.bf16.msra.mxu0 %v275
  %540 = vmatprep.subr.bf16.mxu0 %v274
  %541 = vmatpush1.bf16.msra.mxu0 %v273
  %542 = vmatprep.subr.bf16.mxu0 %v272
  %543 = vmatpush1.bf16.msra.mxu0 %v271
  %544 = vmatprep.subr.bf16.mxu0 %v270
  %545 = vmatpush1.bf16.msra.mxu0 %v269
  %546 = vmatprep.subr.bf16.mxu0 %v268
  %547 = vmatpush1.bf16.msra.mxu0 %v267
  %548 = vmatprep.subr.bf16.mxu0 %v266
  %549 = vmatpush1.bf16.msra.mxu0 %v265
  %550 = vmatprep.subr.bf16.mxu0 %v264
  %551 = vmatpush1.bf16.msra.mxu0 %v263
  %552 = vmatprep.subr.bf16.mxu0 %v262
  %553 = vmatpush1.bf16.msra.mxu0 %v261
  %554 = vmatprep.subr.bf16.mxu0 0
  %555 = vmatpush2.bf16.msra.mxu0 0
  %556 = vmatprep.subr.bf16.mxu0 0
  %557 = vmatpush2.bf16.msra.mxu0 0
  %558 = vmatprep.subr.bf16.mxu0 0
  %559 = vmatpush2.bf16.msra.mxu0 0
  %560 = vmatprep.subr.bf16.mxu0 0
  %561 = vmatpush2.bf16.msra.mxu0 0
  %562 = vmatprep.subr.bf16.mxu0 0
  %563 = vmatpush2.bf16.msra.mxu0 0
  %564 = vmatprep.subr.bf16.mxu0 0
  %565 = vmatpush2.bf16.msra.mxu0 0
  %566 = vmatprep.subr.bf16.mxu0 0
  %567 = vmatpush2.bf16.msra.mxu0 0
  %568 = vmatprep.subr.bf16.mxu0 0
  %569 = vmatpush2.bf16.msra.mxu0 0
  %570 = vmatprep.mubr.bf16.mxu0 0
  %571 = vmatmul.mubr.bf16.gmra.mxu0 %v537
  %v572 = vpop.f32.mrf.mxu0
  %v573 = vadd.f32 0.0, %v572
  %v574 = vpop.f32.mrf.mxu0
  %v575 = vadd.f32 0.0, %v574
  %v576 = vpop.f32.mrf.mxu0
  %v577 = vpop.f32.mrf.mxu0
  %578 = vdwg.mxu0
  %v579 = vadd.f32 %v535, %v573
  %v580 = vxor.u32 %v579, 2147483648
  %v581 = vmul.f32 %v580, 1.442695
  %v582 = vpow.pop %v581
  %v583 = vadd.f32 %v582, 1.0
  %v584 = vrcp.pop %v583
  %v585 = vmul.f32 1.0, %v584
  %v586 = vmul.f32 %v585, %v575
  %v587 = vadd.f32 %v536, %v586
  %v588 = vtanh.pop %v587
  %v589 = vsub.f32 %v588, %v534
  %590 = vset.pattern.permute.xlu0 4
  %591 = vperm.xlu0 %590, %v208
  %v592 = vpop.permute.xlu0 %591
  %v594 = vmul.f32 %v592, %v589
  %v595 = vadd.f32 %v534, %v594
  %v596 = vld [vmem:[#allocation2 + $0x50] sm:$0xff]
  %v597 = vld [vmem:[#allocation2 + $0x58] sm:$0xff]
  %v598 = vpack.c.bf16 %v595, %v595
  %599 = vmatprep.subr.bf16.mxu0 %v276
  %600 = vmatpush1.bf16.msra.mxu0 %v275
  %601 = vmatprep.subr.bf16.mxu0 %v274
  %602 = vmatpush1.bf16.msra.mxu0 %v273
  %603 = vmatprep.subr.bf16.mxu0 %v272
  %604 = vmatpush1.bf16.msra.mxu0 %v271
  %605 = vmatprep.subr.bf16.mxu0 %v270
  %606 = vmatpush1.bf16.msra.mxu0 %v269
  %607 = vmatprep.subr.bf16.mxu0 %v268
  %608 = vmatpush1.bf16.msra.mxu0 %v267
  %609 = vmatprep.subr.bf16.mxu0 %v266
  %610 = vmatpush1.bf16.msra.mxu0 %v265
  %611 = vmatprep.subr.bf16.mxu0 %v264
  %612 = vmatpush1.bf16.msra.mxu0 %v263
  %613 = vmatprep.subr.bf16.mxu0 %v262
  %614 = vmatpush1.bf16.msra.mxu0 %v261
  %615 = vmatprep.subr.bf16.mxu0 0
  %616 = vmatpush2.bf16.msra.mxu0 0
  %617 = vmatprep.subr.bf16.mxu0 0
  %618 = vmatpush2.bf16.msra.mxu0 0
  %619 = vmatprep.subr.bf16.mxu0 0
  %620 = vmatpush2.bf16.msra.mxu0 0
  %621 = vmatprep.subr.bf16.mxu0 0
  %622 = vmatpush2.bf16.msra.mxu0 0
  %623 = vmatprep.subr.bf16.mxu0 0
  %624 = vmatpush2.bf16.msra.mxu0 0
  %625 = vmatprep.subr.bf16.mxu0 0
  %626 = vmatpush2.bf16.msra.mxu0 0
  %627 = vmatprep.subr.bf16.mxu0 0
  %628 = vmatpush2.bf16.msra.mxu0 0
  %629 = vmatprep.subr.bf16.mxu0 0
  %630 = vmatpush2.bf16.msra.mxu0 0
  %631 = vmatprep.mubr.bf16.mxu0 0
  %632 = vmatmul.mubr.bf16.gmra.mxu0 %v598
  %v633 = vpop.f32.mrf.mxu0
  %v634 = vadd.f32 0.0, %v633
  %v635 = vpop.f32.mrf.mxu0
  %v636 = vadd.f32 0.0, %v635
  %v637 = vpop.f32.mrf.mxu0
  %v638 = vpop.f32.mrf.mxu0
  %639 = vdwg.mxu0
  %v640 = vadd.f32 %v596, %v634
  %v641 = vxor.u32 %v640, 2147483648
  %v642 = vmul.f32 %v641, 1.442695
  %v643 = vpow.pop %v642
  %v644 = vadd.f32 %v643, 1.0
  %v645 = vrcp.pop %v644
  %v646 = vmul.f32 1.0, %v645
  %v647 = vmul.f32 %v646, %v636
  %v648 = vadd.f32 %v597, %v647
  %v649 = vtanh.pop %v648
  %v650 = vsub.f32 %v649, %v595
  %651 = vset.pattern.permute.xlu0 5
  %652 = vperm.xlu0 %651, %v208
  %v653 = vpop.permute.xlu0 %652
  %v655 = vmul.f32 %v653, %v650
  %v656 = vadd.f32 %v595, %v655
  %v657 = vld [vmem:[#allocation2 + $0x60] sm:$0xff]
  %v658 = vld [vmem:[#allocation2 + $0x68] sm:$0xff]
  %v659 = vpack.c.bf16 %v656, %v656
  %660 = vmatprep.subr.bf16.mxu0 %v276
  %661 = vmatpush1.bf16.msra.mxu0 %v275
  %662 = vmatprep.subr.bf16.mxu0 %v274
  %663 = vmatpush1.bf16.msra.mxu0 %v273
  %664 = vmatprep.subr.bf16.mxu0 %v272
  %665 = vmatpush1.bf16.msra.mxu0 %v271
  %666 = vmatprep.subr.bf16.mxu0 %v270
  %667 = vmatpush1.bf16.msra.mxu0 %v269
  %668 = vmatprep.subr.bf16.mxu0 %v268
  %669 = vmatpush1.bf16.msra.mxu0 %v267
  %670 = vmatprep.subr.bf16.mxu0 %v266
  %671 = vmatpush1.bf16.msra.mxu0 %v265
  %672 = vmatprep.subr.bf16.mxu0 %v264
  %673 = vmatpush1.bf16.msra.mxu0 %v263
  %674 = vmatprep.subr.bf16.mxu0 %v262
  %675 = vmatpush1.bf16.msra.mxu0 %v261
  %676 = vmatprep.subr.bf16.mxu0 0
  %677 = vmatpush2.bf16.msra.mxu0 0
  %678 = vmatprep.subr.bf16.mxu0 0
  %679 = vmatpush2.bf16.msra.mxu0 0
  %680 = vmatprep.subr.bf16.mxu0 0
  %681 = vmatpush2.bf16.msra.mxu0 0
  %682 = vmatprep.subr.bf16.mxu0 0
  %683 = vmatpush2.bf16.msra.mxu0 0
  %684 = vmatprep.subr.bf16.mxu0 0
  %685 = vmatpush2.bf16.msra.mxu0 0
  %686 = vmatprep.subr.bf16.mxu0 0
  %687 = vmatpush2.bf16.msra.mxu0 0
  %688 = vmatprep.subr.bf16.mxu0 0
  %689 = vmatpush2.bf16.msra.mxu0 0
  %690 = vmatprep.subr.bf16.mxu0 0
  %691 = vmatpush2.bf16.msra.mxu0 0
  %692 = vmatprep.mubr.bf16.mxu0 0
  %693 = vmatmul.mubr.bf16.gmra.mxu0 %v659
  %v694 = vpop.f32.mrf.mxu0
  %v695 = vadd.f32 0.0, %v694
  %v696 = vpop.f32.mrf.mxu0
  %v697 = vadd.f32 0.0, %v696
  %v698 = vpop.f32.mrf.mxu0
  %v699 = vpop.f32.mrf.mxu0
  %700 = vdwg.mxu0
  %v701 = vadd.f32 %v657, %v695
  %v702 = vxor.u32 %v701, 2147483648
  %v703 = vmul.f32 %v702, 1.442695
  %v704 = vpow.pop %v703
  %v705 = vadd.f32 %v704, 1.0
  %v706 = vrcp.pop %v705
  %v707 = vmul.f32 1.0, %v706
  %v708 = vmul.f32 %v707, %v697
  %v709 = vadd.f32 %v658, %v708
  %v710 = vtanh.pop %v709
  %v711 = vsub.f32 %v710, %v656
  %712 = vset.pattern.permute.xlu0 6
  %713 = vperm.xlu0 %712, %v208
  %v714 = vpop.permute.xlu0 %713
  %v716 = vmul.f32 %v714, %v711
  %v717 = vadd.f32 %v656, %v716
  %v718 = vld [vmem:[#allocation2 + $0x70] sm:$0xff]
  %v719 = vld [vmem:[#allocation2 + $0x78] sm:$0xff]
  %v720 = vpack.c.bf16 %v717, %v717
  %721 = vmatprep.subr.bf16.mxu0 %v276
  %722 = vmatpush1.bf16.msra.mxu0 %v275
  %723 = vmatprep.subr.bf16.mxu0 %v274
  %724 = vmatpush1.bf16.msra.mxu0 %v273
  %725 = vmatprep.subr.bf16.mxu0 %v272
  %726 = vmatpush1.bf16.msra.mxu0 %v271
  %727 = vmatprep.subr.bf16.mxu0 %v270
  %728 = vmatpush1.bf16.msra.mxu0 %v269
  %729 = vmatprep.subr.bf16.mxu0 %v268
  %730 = vmatpush1.bf16.msra.mxu0 %v267
  %731 = vmatprep.subr.bf16.mxu0 %v266
  %732 = vmatpush1.bf16.msra.mxu0 %v265
  %733 = vmatprep.subr.bf16.mxu0 %v264
  %734 = vmatpush1.bf16.msra.mxu0 %v263
  %735 = vmatprep.subr.bf16.mxu0 %v262
  %736 = vmatpush1.bf16.msra.mxu0 %v261
  %737 = vmatprep.subr.bf16.mxu0 0
  %738 = vmatpush2.bf16.msra.mxu0 0
  %739 = vmatprep.subr.bf16.mxu0 0
  %740 = vmatpush2.bf16.msra.mxu0 0
  %741 = vmatprep.subr.bf16.mxu0 0
  %742 = vmatpush2.bf16.msra.mxu0 0
  %743 = vmatprep.subr.bf16.mxu0 0
  %744 = vmatpush2.bf16.msra.mxu0 0
  %745 = vmatprep.subr.bf16.mxu0 0
  %746 = vmatpush2.bf16.msra.mxu0 0
  %747 = vmatprep.subr.bf16.mxu0 0
  %748 = vmatpush2.bf16.msra.mxu0 0
  %749 = vmatprep.subr.bf16.mxu0 0
  %750 = vmatpush2.bf16.msra.mxu0 0
  %751 = vmatprep.subr.bf16.mxu0 0
  %752 = vmatpush2.bf16.msra.mxu0 0
  %753 = vmatprep.mubr.bf16.mxu0 0
  %754 = vmatmul.mubr.bf16.gmra.mxu0 %v720
  %v755 = vpop.f32.mrf.mxu0
  %v756 = vadd.f32 0.0, %v755
  %v757 = vpop.f32.mrf.mxu0
  %v758 = vadd.f32 0.0, %v757
  %v759 = vpop.f32.mrf.mxu0
  %v760 = vpop.f32.mrf.mxu0
  %761 = vdwg.mxu0
  %v762 = vadd.f32 %v718, %v756
  %v763 = vxor.u32 %v762, 2147483648
  %v764 = vmul.f32 %v763, 1.442695
  %v765 = vpow.pop %v764
  %v766 = vadd.f32 %v765, 1.0
  %v767 = vrcp.pop %v766
  %v768 = vmul.f32 1.0, %v767
  %v769 = vmul.f32 %v768, %v758
  %v770 = vadd.f32 %v719, %v769
  %v771 = vtanh.pop %v770
  %v772 = vsub.f32 %v771, %v717
  %773 = vset.pattern.permute.xlu0 7
  %774 = vperm.xlu0 %773, %v208
  %v775 = vpop.permute.xlu0 %774
  %v777 = vmul.f32 %v775, %v772
  %v778 = vadd.f32 %v717, %v777
  %779 = vst [vmem:[%s5] sm:$0xff] %v778
  // Predicated region
  $region26: #{attention_gru.1} parent=0 // pred_check
    _
  $region27: #{attention_gru.1} parent=0 // pred_check_branch
    %781 = sbr.rel (0) target = $region29
  $region28: #{attention_gru.1} parent=0 // pred_region
    _
  $region29: #{attention_gru.1} parent=0 // pred_fallthru
    _
  // Predicated region
  $region30: #{attention_gru.1} parent=0 // pred_check
    _
  $region31: #{attention_gru.1} parent=0 // pred_check_branch
    %783 = sbr.rel (0) target = $region33
  $region32: #{attention_gru.1} parent=0 // pred_region
    _
  $region33: #{attention_gru.1} parent=0 // pred_fallthru
    _

</llo_original>
